<compile_context>
chip_gen: v7x
topology: tpu7x:2x2x1
jax: 0.10.0
libtpu: 0.0.40
codegen_flags: <defaults>
</compile_context>

<pallas_src>
import math

import numpy as np
import jax
import jax.numpy as jnp
from jax.experimental import pallas as pl
from jax.experimental.pallas import tpu as pltpu


def _egp_kernel(x_ref, rowm_ref, colm_ref, wp_ref, bp_ref, wq_ref, bq_ref,
                cos2_ref, sin2_ref, rot2_ref, out_ref,
                qkm_ref, rb_ref, cbt_ref, rbh_ref):
    S, D2 = cos2_ref.shape
    D = D2 // 2
    heads = rb_ref.shape[1]
    TQ = out_ref.shape[2]

    h = pl.program_id(1)
    qt = pl.program_id(2)

    # ------------------------------------------------------------------
    # Per-batch precompute: runs once per batch element (h==0, qt==0).
    # ------------------------------------------------------------------
    @pl.when((h == 0) & (qt == 0))
    def _precompute():
        x = x_ref[0]                                              # [S, H]
        # p_dense as a single wide matmul -> [S, 2D]
        # TODO(synk): pass precision=jax.lax.Precision.HIGHEST to the dots if
        # strict fp32 parity with PyTorch is required (default MXU precision).
        seq = (jnp.dot(x, wp_ref[...], preferred_element_type=jnp.float32)
               + bp_ref[...])

        # RoPE on both halves at once via a block-diagonal permutation/sign
        # matrix; the q-half cos/sin tables already carry the 1/sqrt(D) scale.
        roped = (seq * cos2_ref[...]
                 + jnp.dot(seq, rot2_ref[...],
                           preferred_element_type=jnp.float32) * sin2_ref[...])
        qw = roped[:, :D]                                         # scaled q
        kw = roped[:, D:]

        qk = jax.lax.dot_general(qw, kw, (((1,), (1,)), ((), ())),
                                 preferred_element_type=jnp.float32)  # [S, S]

        # Additive mask: padded row/col -> -inf (precomputed vectors from the
        # wrapper), strict lower triangle -> -1e12.  No S*S boolean temps.
        rid = jax.lax.broadcasted_iota(jnp.int32, (S, S), 0)
        cid = jax.lax.broadcasted_iota(jnp.int32, (S, S), 1)
        qkm_ref[...] = (qk + rowm_ref[0] + colm_ref[0]
                        + jnp.where(rid > cid, -1e12, 0.0))

        # q_dense biases on the pre-RoPE features.  wq/bq were re-ordered in
        # the wrapper so cols [:heads] are row biases, [heads:] column biases.
        bias = (jnp.dot(seq, wq_ref[...], preferred_element_type=jnp.float32)
                + bq_ref[...]) * 0.5                              # [S, 2*heads]
        rb_ref[...] = bias[:, :heads]                             # [S, heads]
        cbt_ref[...] = jnp.transpose(bias[:, heads:])             # [heads, S]

    # ------------------------------------------------------------------
    # Per-(batch, head): materialize this head's row-bias column once, so the
    # streaming epilogue never runs the one-hot / cross-lane reduce.
    # ------------------------------------------------------------------
    @pl.when(qt == 0)
    def _head_row_bias():
        lane = jax.lax.broadcasted_iota(jnp.int32, rb_ref.shape, 1)
        rbh_ref[...] = jnp.sum(jnp.where(lane == h, rb_ref[...], 0.0),
                               axis=1, keepdims=True)             # [S, 1]

    # ------------------------------------------------------------------
    # Per-tile epilogue: lane-dense (TQ, S) slab -> two broadcast adds -> store.
    # ------------------------------------------------------------------
    q0 = pl.multiple_of(qt * TQ, TQ)
    qkm = qkm_ref[pl.ds(q0, TQ), :]                               # [TQ, S]
    rb = rbh_ref[pl.ds(q0, TQ), :]                                # [TQ, 1]
    cb = cbt_ref[pl.ds(h, 1), :]                                  # [1, S]

    out_ref[...] = (qkm + rb + cb)[None, None].astype(out_ref.dtype)


def _rope_tables(S, D):
    pos = jnp.arange(S, dtype=jnp.float32)[:, None]                    # [S, 1]
    inv = jnp.exp(jnp.arange(0, D, 2, dtype=jnp.float32)
                  * (-math.log(10000.0) / D))
    ang = pos * inv[None, :]                                           # [S, D/2]
    cos_t = jnp.repeat(jnp.cos(ang), 2, axis=-1)                       # [S, D]
    sin_t = jnp.repeat(jnp.sin(ang), 2, axis=-1)                       # [S, D]
    # permutation/sign matrix: (v @ rot)[2i] = -v[2i+1], (v @ rot)[2i+1] = v[2i]
    rot = jnp.zeros((D, D), jnp.float32)
    idx = jnp.arange(0, D, 2)
    rot = rot.at[idx + 1, idx].set(-1.0)
    rot = rot.at[idx, idx + 1].set(1.0)
    return cos_t, sin_t, rot


def _pick_tq(S, target=1024):
    """Largest query-row tile <= target that divides S and is a multiple of 8."""
    if S <= target:
        return S
    t = (target // 8) * 8
    while t >= 8:
        if S % t == 0:
            return t
        t -= 8
    return S


def _vmem_limit_bytes(S, H, D, heads, tq, out_itemsize):
    """Shape-aware VMEM limit: scratch + double-buffered blocks + margin."""
    f32 = 4
    blocks = (S * H                              # x
              + S + S                            # row/col additive masks
              + H * 2 * D + 2 * D                # wp, bp
              + 2 * D * 2 * heads + 2 * heads    # wq, bq
              + 2 * (S * 2 * D)                  # cos2, sin2
              + (2 * D) * (2 * D)) * f32         # rot2
    out_blk = tq * S * out_itemsize
    scratch = (S * S + 2 * S * heads + S) * f32
    need = 2 * (blocks + out_blk) + scratch      # blocks are double-buffered
    return int(min(max(int(need * 1.4), 32 * 1024 * 1024), 48 * 1024 * 1024))


def efficient_global_pointer(x, mask, params, heads, head_size, *,
                             out_dtype=jnp.bfloat16, tq=None):
    """Forward pass of EfficientGlobalPointer -> logits [B, heads, S, S].

    bf16 output by default: the kernel is HBM-writeback bound and -inf/-1e12
    masking survives the cast.  Pass out_dtype=jnp.float32 for exact parity.
    """
    B, S, H = x.shape
    D = head_size
    wp, bp, wq, bq = params["wp"], params["bp"], params["wq"], params["bq"]

    # ---- parameter / table setup (host-side glue, no activation compute) ----
    scale = 1.0 / (D ** 0.5)
    cos_t, sin_t, rot = _rope_tables(S, D)
    # combined RoPE tables for the [S, 2D] p_dense output; q half pre-scaled
    cos2 = jnp.concatenate([cos_t * scale, cos_t], axis=1)             # [S, 2D]
    sin2 = jnp.concatenate([sin_t * scale, sin_t], axis=1)             # [S, 2D]
    rot2 = jnp.zeros((2 * D, 2 * D), jnp.float32)
    rot2 = rot2.at[:D, :D].set(rot).at[D:, D:].set(rot)

    bp2 = bp.reshape(1, 2 * D)
    # q_dense columns: even -> per-row bias, odd -> per-column bias
    wq_m = jnp.concatenate([wq[:, 0::2], wq[:, 1::2]], axis=1)         # [2D, 2H]
    bq_m = jnp.concatenate([bq[0::2], bq[1::2]]).reshape(1, 2 * heads)

    # padding mask as two additive vectors (0 keep, -inf pad); avoids any
    # S*S mask transpose / boolean work inside the kernel.
    mask_f = mask.astype(jnp.float32)
    row_add = jnp.where(mask_f > 0, 0.0, -jnp.inf).reshape(B, S, 1)
    col_add = jnp.where(mask_f > 0, 0.0, -jnp.inf).reshape(B, 1, S)

    if tq is None:
        tq = _pick_tq(S)
    assert S % tq == 0 and (tq == S or tq % 8 == 0)
    n_qt = S // tq

    def const(shape):
        zeros = (0,) * len(shape)
        return pl.BlockSpec(shape, lambda b, h, q: zeros)

    in_specs = [
        pl.BlockSpec((1, S, H), lambda b, h, q: (b, 0, 0)),            # x
        pl.BlockSpec((1, S, 1), lambda b, h, q: (b, 0, 0)),            # row mask add
        pl.BlockSpec((1, 1, S), lambda b, h, q: (b, 0, 0)),            # col mask add
        const((H, 2 * D)), const((1, 2 * D)),                          # wp, bp
        const((2 * D, 2 * heads)), const((1, 2 * heads)),              # wq_m, bq_m
        const((S, 2 * D)), const((S, 2 * D)), const((2 * D, 2 * D)),   # cos2, sin2, rot2
    ]

    vmem_limit = _vmem_limit_bytes(S, H, D, heads, tq,
                                   np.dtype(out_dtype).itemsize)

    return pl.pallas_call(
        _egp_kernel,
        out_shape=jax.ShapeDtypeStruct((B, heads, S, S), out_dtype),
        grid=(B, heads, n_qt),
        in_specs=in_specs,
        out_specs=pl.BlockSpec((1, 1, tq, S), lambda b, h, q: (b, h, q, 0)),
        scratch_shapes=[
            pltpu.VMEM((S, S), jnp.float32),       # masked + scaled qk
            pltpu.VMEM((S, heads), jnp.float32),   # per-head row bias table
            pltpu.VMEM((heads, S), jnp.float32),   # per-head col bias (transposed)
            pltpu.VMEM((S, 1), jnp.float32),       # current head's row-bias column
        ],
        compiler_params=pltpu.CompilerParams(
            dimension_semantics=("parallel", "arbitrary", "arbitrary"),
            vmem_limit_bytes=vmem_limit,
        ),
    )(x, row_add, col_add, wp, bp2, wq_m, bq_m, cos2, sin2, rot2)


def reference(x, mask, params, heads, head_size):
    """Pure-JAX transcription of the PyTorch forward for verification."""
    D = head_size
    B, S, H = x.shape
    wp, bp, wq, bq = params["wp"], params["bp"], params["wq"], params["bq"]
    seq = x @ wp + bp
    qw, kw = seq[..., :D], seq[..., D:]
    cos_t, sin_t, _ = _rope_tables(S, D)

    def rope(v):
        v2 = jnp.stack([-v[..., 1::2], v[..., ::2]], axis=-1).reshape(v.shape)
        return v * cos_t + v2 * sin_t

    qw, kw = rope(qw), rope(kw)
    logits = jnp.einsum('bmd,bnd->bmn', qw, kw) / (D ** 0.5)
    bias_in = seq @ wq + bq
    bias = bias_in.reshape(B, S, heads, 2).transpose(0, 2, 1, 3) / 2
    logits = logits[:, None] + bias[..., :1] + jnp.swapaxes(bias[..., 1:], 2, 3)
    m = mask.astype(jnp.float32)
    am1 = (1 - m[:, None, :, None]).astype(bool)
    am2 = (1 - m[:, None, None, :]).astype(bool)
    logits = jnp.where(am1, -jnp.inf, logits)
    logits = jnp.where(am2, -jnp.inf, logits)
    tril = jnp.tril(jnp.ones((S, S), jnp.float32), -1)
    return logits - tril[None, None] * 1e12


if __name__ == "__main__":
    B, S, H = 2, 8, 32
    heads, head_size = 4, 16

    key = jax.random.PRNGKey(0)
    k1, k2, k3, k4, k5 = jax.random.split(key, 5)
    x = jax.random.normal(k1, (B, S, H), dtype=jnp.float32)
    params = {
        "wp": jax.random.normal(k2, (H, 2 * head_size), dtype=jnp.float32) * 0.05,
        "bp": jax.random.normal(k3, (2 * head_size,), dtype=jnp.float32) * 0.05,
        "wq": jax.random.normal(k4, (2 * head_size, 2 * heads), dtype=jnp.float32) * 0.05,
        "bq": jax.random.normal(k5, (2 * heads,), dtype=jnp.float32) * 0.05,
    }
    mask = jnp.array([[1.0] * S, [1.0] * (S - 2) + [0.0] * 2], dtype=jnp.float32)

    ref = reference(x, mask, params, heads, head_size)

    # default (bf16) output path: the one used for performance
    out_bf16 = efficient_global_pointer(x, mask, params, heads, head_size)
    out_bf16 = jax.block_until_ready(out_bf16)
    assert out_bf16.shape == (B, heads, S, S) and out_bf16.dtype == jnp.bfloat16
    assert bool(jnp.allclose(out_bf16.astype(jnp.float32), ref,
                             rtol=2e-2, atol=2e-2)), "bf16 mismatch vs. reference"

    # f32 output path: tight numerical check
    out_f32 = efficient_global_pointer(x, mask, params, heads, head_size,
                                       out_dtype=jnp.float32)
    out_f32 = jax.block_until_ready(out_f32)
    assert bool(jnp.allclose(out_f32, ref, rtol=1e-3, atol=1e-3)), \
        "f32 mismatch vs. pure-JAX reference"

    print("KERNEL_OK")
</pallas_src>

<mosaic_0001>
module attributes {stable_mosaic.version = 11 : i64} {
  func.func @_egp_kernel(%arg0: i32, %arg1: i32, %arg2: i32, %arg3: memref<1x8x32xf32, #tpu.memory_space<vmem>>, %arg4: memref<1x8x1xf32, #tpu.memory_space<vmem>>, %arg5: memref<1x1x8xf32, #tpu.memory_space<vmem>>, %arg6: memref<32x32xf32, #tpu.memory_space<vmem>>, %arg7: memref<1x32xf32, #tpu.memory_space<vmem>>, %arg8: memref<32x8xf32, #tpu.memory_space<vmem>>, %arg9: memref<1x8xf32, #tpu.memory_space<vmem>>, %arg10: memref<8x32xf32, #tpu.memory_space<vmem>>, %arg11: memref<8x32xf32, #tpu.memory_space<vmem>>, %arg12: memref<32x32xf32, #tpu.memory_space<vmem>>, %arg13: memref<1x1x8x8xbf16, #tpu.memory_space<vmem>>, %arg14: memref<8x8xf32, #tpu.memory_space<vmem>>, %arg15: memref<8x4xf32, #tpu.memory_space<vmem>>, %arg16: memref<4x8xf32, #tpu.memory_space<vmem>>, %arg17: memref<8x1xf32, #tpu.memory_space<vmem>>) attributes {dimension_semantics = [#tpu.dimension_semantics<parallel>, #tpu.dimension_semantics<arbitrary>, #tpu.dimension_semantics<arbitrary>], iteration_bounds = array<i64: 2, 4, 1>, scalar_prefetch = 0 : i64, scratch_operands = 4 : i64, tpu.core_type = #tpu.core_type<tc>, window_params = [{transform_indices = @transform_0, window_bounds = array<i64: 1, 8, 32>}, {transform_indices = @transform_1, window_bounds = array<i64: 1, 8, 1>}, {transform_indices = @transform_2, window_bounds = array<i64: 1, 1, 8>}, {pipeline_mode = #tpu.pipeline_mode<synchronous>, transform_indices = @transform_3, window_bounds = array<i64: 32, 32>}, {pipeline_mode = #tpu.pipeline_mode<synchronous>, transform_indices = @transform_4, window_bounds = array<i64: 1, 32>}, {pipeline_mode = #tpu.pipeline_mode<synchronous>, transform_indices = @transform_5, window_bounds = array<i64: 32, 8>}, {pipeline_mode = #tpu.pipeline_mode<synchronous>, transform_indices = @transform_6, window_bounds = array<i64: 1, 8>}, {pipeline_mode = #tpu.pipeline_mode<synchronous>, transform_indices = @transform_7, window_bounds = array<i64: 8, 32>}, {pipeline_mode = #tpu.pipeline_mode<synchronous>, transform_indices = @transform_8, window_bounds = array<i64: 8, 32>}, {pipeline_mode = #tpu.pipeline_mode<synchronous>, transform_indices = @transform_9, window_bounds = array<i64: 32, 32>}, {transform_indices = @transform_10, window_bounds = array<i64: 1, 1, 8, 8>}]} {
    %c0_i32 = arith.constant 0 : i32
    %0 = arith.cmpi eq, %arg1, %c0_i32 : i32
    %c0_i32_0 = arith.constant 0 : i32
    %1 = arith.cmpi eq, %arg2, %c0_i32_0 : i32
    %2 = arith.andi %0, %1 : i1
    %3 = arith.extui %2 : i1 to i32
    %c0_i32_1 = arith.constant 0 : i32
    %4 = arith.cmpi ne, %3, %c0_i32_1 : i32
    scf.if %4 {
      %c0_10 = arith.constant 0 : index
      %c0_11 = arith.constant 0 : index
      %c0_12 = arith.constant 0 : index
      %23 = vector.load %arg3[%c0_10, %c0_11, %c0_12] : memref<1x8x32xf32, #tpu.memory_space<vmem>>, vector<1x8x32xf32>
      %24 = vector.shape_cast %23 : vector<1x8x32xf32> to vector<8x32xf32>
      %c0_13 = arith.constant 0 : index
      %c0_14 = arith.constant 0 : index
      %25 = vector.load %arg6[%c0_13, %c0_14] : memref<32x32xf32, #tpu.memory_space<vmem>>, vector<32x32xf32>
      %cst = arith.constant dense<0.000000e+00> : vector<8x32xf32>
      %26 = tpu.matmul %24, %25, %cst {dimension_numbers = #tpu.dot_dimension_numbers<[1], [0], [0], [1], [0, 0, 1, 1], [], []>} : vector<8x32xf32>, vector<32x32xf32>, vector<8x32xf32> -> vector<8x32xf32>
      %c0_15 = arith.constant 0 : index
      %c0_16 = arith.constant 0 : index
      %27 = vector.load %arg7[%c0_15, %c0_16] : memref<1x32xf32, #tpu.memory_space<vmem>>, vector<1x32xf32>
      %28 = vector.broadcast %27 : vector<1x32xf32> to vector<8x32xf32>
      %29 = arith.addf %26, %28 : vector<8x32xf32>
      %c0_17 = arith.constant 0 : index
      %c0_18 = arith.constant 0 : index
      %30 = vector.load %arg10[%c0_17, %c0_18] : memref<8x32xf32, #tpu.memory_space<vmem>>, vector<8x32xf32>
      %31 = arith.mulf %29, %30 : vector<8x32xf32>
      %c0_19 = arith.constant 0 : index
      %c0_20 = arith.constant 0 : index
      %32 = vector.load %arg12[%c0_19, %c0_20] : memref<32x32xf32, #tpu.memory_space<vmem>>, vector<32x32xf32>
      %cst_21 = arith.constant dense<0.000000e+00> : vector<8x32xf32>
      %33 = tpu.matmul %29, %32, %cst_21 {dimension_numbers = #tpu.dot_dimension_numbers<[1], [0], [0], [1], [0, 0, 1, 1], [], []>} : vector<8x32xf32>, vector<32x32xf32>, vector<8x32xf32> -> vector<8x32xf32>
      %c0_22 = arith.constant 0 : index
      %c0_23 = arith.constant 0 : index
      %34 = vector.load %arg11[%c0_22, %c0_23] : memref<8x32xf32, #tpu.memory_space<vmem>>, vector<8x32xf32>
      %35 = arith.mulf %33, %34 : vector<8x32xf32>
      %36 = arith.addf %31, %35 : vector<8x32xf32>
      %37 = vector.extract_strided_slice %36 {offsets = [0, 0], sizes = [8, 16], strides = [1, 1]} : vector<8x32xf32> to vector<8x16xf32>
      %38 = vector.extract_strided_slice %36 {offsets = [0, 16], sizes = [8, 16], strides = [1, 1]} : vector<8x32xf32> to vector<8x16xf32>
      %cst_24 = arith.constant dense<0.000000e+00> : vector<8x8xf32>
      %39 = tpu.matmul %37, %38, %cst_24 {dimension_numbers = #tpu.dot_dimension_numbers<[1], [1], [0], [0], [0, 0, 1, 0], [], []>} : vector<8x16xf32>, vector<8x16xf32>, vector<8x8xf32> -> vector<8x8xf32>
      %40 = tpu.iota {dimensions = array<i32: 0>} : vector<8x8xi32>
      %41 = tpu.iota {dimensions = array<i32: 1>} : vector<8x8xi32>
      %c0_25 = arith.constant 0 : index
      %c0_26 = arith.constant 0 : index
      %c0_27 = arith.constant 0 : index
      %42 = vector.load %arg4[%c0_25, %c0_26, %c0_27] : memref<1x8x1xf32, #tpu.memory_space<vmem>>, vector<1x8x1xf32>
      %43 = vector.shape_cast %42 : vector<1x8x1xf32> to vector<8x1xf32>
      %44 = vector.broadcast %43 : vector<8x1xf32> to vector<8x8xf32>
      %45 = arith.addf %39, %44 : vector<8x8xf32>
      %c0_28 = arith.constant 0 : index
      %c0_29 = arith.constant 0 : index
      %c0_30 = arith.constant 0 : index
      %46 = vector.load %arg5[%c0_28, %c0_29, %c0_30] : memref<1x1x8xf32, #tpu.memory_space<vmem>>, vector<1x1x8xf32>
      %47 = vector.shape_cast %46 : vector<1x1x8xf32> to vector<1x8xf32>
      %48 = vector.broadcast %47 : vector<1x8xf32> to vector<8x8xf32>
      %49 = arith.addf %45, %48 : vector<8x8xf32>
      %50 = arith.cmpi sgt, %40, %41 : vector<8x8xi32>
      %cst_31 = arith.constant -9.99999995E+11 : f32
      %cst_32 = arith.constant 0.000000e+00 : f32
      %51 = vector.broadcast %cst_31 : f32 to vector<8x8xf32>
      %52 = vector.broadcast %cst_32 : f32 to vector<8x8xf32>
      %53 = arith.select %50, %51, %52 : vector<8x8xi1>, vector<8x8xf32>
      %54 = arith.addf %49, %53 : vector<8x8xf32>
      %c0_33 = arith.constant 0 : index
      %c0_34 = arith.constant 0 : index
      %55 = vector.load %arg14[%c0_33, %c0_34] : memref<8x8xf32, #tpu.memory_space<vmem>>, vector<8x8xf32>
      tpu.vector_store %arg14[%c0_33, %c0_34], %54 {strides = array<i32>} : memref<8x8xf32, #tpu.memory_space<vmem>>, vector<8x8xf32>,
      %c0_35 = arith.constant 0 : index
      %c0_36 = arith.constant 0 : index
      %56 = vector.load %arg8[%c0_35, %c0_36] : memref<32x8xf32, #tpu.memory_space<vmem>>, vector<32x8xf32>
      %cst_37 = arith.constant dense<0.000000e+00> : vector<8x8xf32>
      %57 = tpu.matmul %29, %56, %cst_37 {dimension_numbers = #tpu.dot_dimension_numbers<[1], [0], [0], [1], [0, 0, 1, 1], [], []>} : vector<8x32xf32>, vector<32x8xf32>, vector<8x8xf32> -> vector<8x8xf32>
      %c0_38 = arith.constant 0 : index
      %c0_39 = arith.constant 0 : index
      %58 = vector.load %arg9[%c0_38, %c0_39] : memref<1x8xf32, #tpu.memory_space<vmem>>, vector<1x8xf32>
      %59 = vector.broadcast %58 : vector<1x8xf32> to vector<8x8xf32>
      %60 = arith.addf %57, %59 : vector<8x8xf32>
      %cst_40 = arith.constant 5.000000e-01 : f32
      %61 = vector.broadcast %cst_40 : f32 to vector<8x8xf32>
      %62 = arith.mulf %60, %61 : vector<8x8xf32>
      %63 = vector.extract_strided_slice %62 {offsets = [0, 0], sizes = [8, 4], strides = [1, 1]} : vector<8x8xf32> to vector<8x4xf32>
      %c0_41 = arith.constant 0 : index
      %c0_42 = arith.constant 0 : index
      %64 = vector.load %arg15[%c0_41, %c0_42] : memref<8x4xf32, #tpu.memory_space<vmem>>, vector<8x4xf32>
      tpu.vector_store %arg15[%c0_41, %c0_42], %63 {strides = array<i32>} : memref<8x4xf32, #tpu.memory_space<vmem>>, vector<8x4xf32>,
      %65 = vector.extract_strided_slice %62 {offsets = [0, 4], sizes = [8, 4], strides = [1, 1]} : vector<8x8xf32> to vector<8x4xf32>
      %66 = tpu.transpose %65, [1, 0] : vector<8x4xf32> -> vector<4x8xf32>
      %c0_43 = arith.constant 0 : index
      %c0_44 = arith.constant 0 : index
      %67 = vector.load %arg16[%c0_43, %c0_44] : memref<4x8xf32, #tpu.memory_space<vmem>>, vector<4x8xf32>
      tpu.vector_store %arg16[%c0_43, %c0_44], %66 {strides = array<i32>} : memref<4x8xf32, #tpu.memory_space<vmem>>, vector<4x8xf32>,
    } else {
    }
    %c0_i32_2 = arith.constant 0 : i32
    %5 = arith.cmpi eq, %arg2, %c0_i32_2 : i32
    %6 = arith.extui %5 : i1 to i32
    %c0_i32_3 = arith.constant 0 : i32
    %7 = arith.cmpi ne, %6, %c0_i32_3 : i32
    scf.if %7 {
      %23 = tpu.iota {dimensions = array<i32: 1>} : vector<8x4xi32>
      %24 = vector.broadcast %arg1 : i32 to vector<8x4xi32>
      %25 = arith.cmpi eq, %23, %24 : vector<8x4xi32>
      %c0_10 = arith.constant 0 : index
      %c0_11 = arith.constant 0 : index
      %26 = vector.load %arg15[%c0_10, %c0_11] : memref<8x4xf32, #tpu.memory_space<vmem>>, vector<8x4xf32>
      %cst = arith.constant 0.000000e+00 : f32
      %27 = vector.broadcast %cst : f32 to vector<8x4xf32>
      %28 = arith.select %25, %26, %27 : vector<8x4xi1>, vector<8x4xf32>
      %cst_12 = arith.constant dense<0.000000e+00> : vector<8xf32>
      %29 = vector.multi_reduction <add>, %28, %cst_12 [1] : vector<8x4xf32> to vector<8xf32>
      %30 = vector.shape_cast %29 : vector<8xf32> to vector<8x1xf32>
      %c0_13 = arith.constant 0 : index
      %c0_14 = arith.constant 0 : index
      %31 = vector.load %arg17[%c0_13, %c0_14] : memref<8x1xf32, #tpu.memory_space<vmem>>, vector<8x1xf32>
      tpu.vector_store %arg17[%c0_13, %c0_14], %30 {strides = array<i32>} : memref<8x1xf32, #tpu.memory_space<vmem>>, vector<8x1xf32>,
    } else {
    }
    %c8_i32 = arith.constant 8 : i32
    %8 = arith.muli %arg2, %c8_i32 : i32
    %9 = tpu.assume_multiple %8, 8 : i32
    %10 = arith.index_cast %9 : i32 to index
    %c0 = arith.constant 0 : index
    %11 = vector.load %arg14[%10, %c0] : memref<8x8xf32, #tpu.memory_space<vmem>>, vector<8x8xf32>
    %12 = arith.index_cast %9 : i32 to index
    %c0_4 = arith.constant 0 : index
    %13 = vector.load %arg17[%12, %c0_4] : memref<8x1xf32, #tpu.memory_space<vmem>>, vector<8x1xf32>
    %14 = arith.index_cast %arg1 : i32 to index
    %c0_5 = arith.constant 0 : index
    %15 = vector.load %arg16[%14, %c0_5] : memref<4x8xf32, #tpu.memory_space<vmem>>, vector<1x8xf32>
    %16 = vector.broadcast %13 : vector<8x1xf32> to vector<8x8xf32>
    %17 = arith.addf %11, %16 : vector<8x8xf32>
    %18 = vector.broadcast %15 : vector<1x8xf32> to vector<8x8xf32>
    %19 = arith.addf %17, %18 : vector<8x8xf32>
    %20 = vector.shape_cast %19 : vector<8x8xf32> to vector<1x1x8x8xf32>
    %21 = arith.truncf %20 : vector<1x1x8x8xf32> to vector<1x1x8x8xbf16>
    %c0_6 = arith.constant 0 : index
    %c0_7 = arith.constant 0 : index
    %c0_8 = arith.constant 0 : index
    %c0_9 = arith.constant 0 : index
    %22 = vector.load %arg13[%c0_6, %c0_7, %c0_8, %c0_9] : memref<1x1x8x8xbf16, #tpu.memory_space<vmem>>, vector<1x1x8x8xbf16>
    tpu.vector_store %arg13[%c0_6, %c0_7, %c0_8, %c0_9], %21 {strides = array<i32>} : memref<1x1x8x8xbf16, #tpu.memory_space<vmem>>, vector<1x1x8x8xbf16>,
    return
  }
  func.func @transform_0(%arg0: i32, %arg1: i32, %arg2: i32) -> (i32, i32, i32) {
    %c0_i32 = arith.constant 0 : i32
    %c0_i32_0 = arith.constant 0 : i32
    %c0_i32_1 = arith.constant 0 : i32
    return %arg0, %c0_i32, %c0_i32_0 : i32, i32, i32
  }
  func.func @transform_1(%arg0: i32, %arg1: i32, %arg2: i32) -> (i32, i32, i32) {
    %c0_i32 = arith.constant 0 : i32
    %c0_i32_0 = arith.constant 0 : i32
    %c0_i32_1 = arith.constant 0 : i32
    return %arg0, %c0_i32, %c0_i32_0 : i32, i32, i32
  }
  func.func @transform_2(%arg0: i32, %arg1: i32, %arg2: i32) -> (i32, i32, i32) {
    %c0_i32 = arith.constant 0 : i32
    %c0_i32_0 = arith.constant 0 : i32
    %c0_i32_1 = arith.constant 0 : i32
    return %arg0, %c0_i32, %c0_i32_0 : i32, i32, i32
  }
  func.func @transform_3(%arg0: i32, %arg1: i32, %arg2: i32) -> (i32, i32) {
    %c0_i32 = arith.constant 0 : i32
    %c0_i32_0 = arith.constant 0 : i32
    %c0_i32_1 = arith.constant 0 : i32
    return %c0_i32, %c0_i32_0 : i32, i32
  }
  func.func @transform_4(%arg0: i32, %arg1: i32, %arg2: i32) -> (i32, i32) {
    %c0_i32 = arith.constant 0 : i32
    %c0_i32_0 = arith.constant 0 : i32
    %c0_i32_1 = arith.constant 0 : i32
    return %c0_i32, %c0_i32_0 : i32, i32
  }
  func.func @transform_5(%arg0: i32, %arg1: i32, %arg2: i32) -> (i32, i32) {
    %c0_i32 = arith.constant 0 : i32
    %c0_i32_0 = arith.constant 0 : i32
    %c0_i32_1 = arith.constant 0 : i32
    return %c0_i32, %c0_i32_0 : i32, i32
  }
  func.func @transform_6(%arg0: i32, %arg1: i32, %arg2: i32) -> (i32, i32) {
    %c0_i32 = arith.constant 0 : i32
    %c0_i32_0 = arith.constant 0 : i32
    %c0_i32_1 = arith.constant 0 : i32
    return %c0_i32, %c0_i32_0 : i32, i32
  }
  func.func @transform_7(%arg0: i32, %arg1: i32, %arg2: i32) -> (i32, i32) {
    %c0_i32 = arith.constant 0 : i32
    %c0_i32_0 = arith.constant 0 : i32
    %c0_i32_1 = arith.constant 0 : i32
    return %c0_i32, %c0_i32_0 : i32, i32
  }
  func.func @transform_8(%arg0: i32, %arg1: i32, %arg2: i32) -> (i32, i32) {
    %c0_i32 = arith.constant 0 : i32
    %c0_i32_0 = arith.constant 0 : i32
    %c0_i32_1 = arith.constant 0 : i32
    return %c0_i32, %c0_i32_0 : i32, i32
  }
  func.func @transform_9(%arg0: i32, %arg1: i32, %arg2: i32) -> (i32, i32) {
    %c0_i32 = arith.constant 0 : i32
    %c0_i32_0 = arith.constant 0 : i32
    %c0_i32_1 = arith.constant 0 : i32
    return %c0_i32, %c0_i32_0 : i32, i32
  }
  func.func @transform_10(%arg0: i32, %arg1: i32, %arg2: i32) -> (i32, i32, i32, i32) {
    %c0_i32 = arith.constant 0 : i32
    %c0_i32_0 = arith.constant 0 : i32
    return %arg0, %arg1, %arg2, %c0_i32 : i32, i32, i32, i32
  }
}

</mosaic_0001>

<llo_original>
// kernel: tpu_custom_call.1
$region0: #{tpu_custom_call.1}
  #allocation0 [shape = 'u32[]', space=smem, size = 0x4, offset = 0x4, fixed_abs, tag = 'smem constant byte address 0x4 - core index']
  #allocation1 [shape = 'u32[144,128]{1,0:T(1,128)}', space=vmem, size = 0x12000, scoped, tag = 'internal scratch']
  #allocation2 [shape = 'f32[8,8]{1,0:T(8,128)}', space=vmem, size = 0x1000, scoped, tag = 'scratch operand']
  #allocation3 [shape = 'f32[8,4]{1,0:T(8,128)}', space=vmem, size = 0x1000, scoped, tag = 'scratch operand']
  #allocation4 [shape = 'f32[4,8]{1,0:T(4,128)}', space=vmem, size = 0x800, scoped, tag = 'scratch operand']
  #allocation5 [shape = 'f32[8,1]{1,0:T(8,128)}', space=vmem, size = 0x1000, scoped, tag = 'scratch operand']
  %s0 = inlined_call_operand.hbm [shape: f32[2,8,32], index: 0, kind: input, shape index: {}]
  %s1 = inlined_call_operand.vmem [shape: f32[2,8,1], index: 1, kind: input, shape index: {}]
  %s2 = inlined_call_operand.hbm [shape: f32[2,1,8], index: 2, kind: input, shape index: {}]
  %s3 = inlined_call_operand.vmem [shape: f32[32,32], index: 3, kind: input, shape index: {}]
  %s4 = inlined_call_operand.hbm [shape: f32[1,32], index: 4, kind: input, shape index: {}]
  %s5 = inlined_call_operand.vmem [shape: f32[32,8], index: 5, kind: input, shape index: {}]
  %s6 = inlined_call_operand.hbm [shape: f32[1,8], index: 6, kind: input, shape index: {}]
  %s7 = inlined_call_operand.vmem [shape: f32[8,32], index: 7, kind: input, shape index: {}]
  %s8 = inlined_call_operand.vmem [shape: f32[8,32], index: 8, kind: input, shape index: {}]
  %s9 = inlined_call_operand.vmem [shape: f32[32,32], index: 9, kind: input, shape index: {}]
  %s10 = inlined_call_operand.hbm [shape: bf16[2,4,8,8], index: 10, kind: output, shape index: {}]
  %s11 = sld [smem:[#allocation0]]
  $region97: #{tpu_custom_call.1} parent=0
    _
  %s13 = ssub.s32 1, %s11
  %s14 = scalar_select 0, %s13, %s11
  $region1: #{tpu_custom_call.1} parent=0
    #allocation6 [shape = 'u8[8192]{0}', space=vmem, size = 0x2000, scoped, tag = 'input window, operand 0']
    #allocation7 [shape = 's32[2]{0}', space=sflag, size = 0x8, scoped, tag = 'scoped memory for tpu_custom_call.1']
    #allocation8 [shape = 's32[2]{0}', space=sflag, size = 0x8, scoped, tag = 'scoped memory for tpu_custom_call.1']
    #allocation9 [shape = 'u8[1024]{0}', space=vmem, size = 0x400, scoped, tag = 'input window, operand 2']
    #allocation10 [shape = 's32[2]{0}', space=sflag, size = 0x8, scoped, tag = 'scoped memory for tpu_custom_call.1']
    #allocation11 [shape = 'u8[512]{0}', space=vmem, size = 0x400, scoped, tag = 'input window, operand 4, single buffered']
    #allocation12 [shape = 'u8[512]{0}', space=vmem, size = 0x400, scoped, tag = 'input window, operand 6, single buffered']
    #allocation13 [shape = 's32[1]{0}', space=sflag, size = 0x4, scoped, tag = 'scoped memory for tpu_custom_call.1']
    #allocation14 [shape = 'u8[4096]{0}', space=vmem, size = 0x1000, scoped, tag = 'output window, operand 0']
    %15 = vsyncpa [#allocation7], 0
    %s16 = scalar_lea.sflag [#allocation7], 1
    %17 = vsyncpa %s16, 0
    %18 = vsyncpa [#allocation10], 0
    %s19 = scalar_lea.sflag [#allocation10], 1
    %20 = vsyncpa %s19, 0
    %21 = vsyncpa [#allocation13], 0
    %22 = vsyncpa [#allocation8], 0
    %s23 = scalar_lea.sflag [#allocation8], 1
    %24 = vsyncpa %s23, 0
    loop: start=0, step=1, limit=10
    $region2: #{tpu_custom_call.1} parent=1 // loop_pre_header
      _
    $region3: #{tpu_custom_call.1} parent=1 // loop_header
      %s26 = sphi 0, %s30
      %p27 = scmp.ge.s32.totalorder %s26, 10
      %s33 = sphi 0, %s52
      %s34 = sphi 0, %s48
      %s35 = sphi 0, %s44
      %s36 = sphi 0, %s33
      %s37 = sphi 0, %s34
      %s38 = sphi 0, %s35
      %s39 = sphi 0, %s36
      %s40 = sphi 0, %s37
      %s41 = sphi 0, %s38
      %s55 = sphi 0, %s57
      %s58 = sphi 0, %s55
      %s59 = sphi 0, %s58
      %s75 = sphi 0, %s59
      %s81 = sphi 0, %s83
      %s84 = sphi 0, %s81
      %s85 = sphi 0, %s84
      %s101 = sphi 0, %s85
      %s107 = sphi 0, %s109
      %s110 = sphi 0, %s107
      %s111 = sphi 0, %s110
      %s127 = sphi 0, %s111
      %s131 = sphi 0, %s131
      %s133 = sphi 0, %s131
      %s134 = sphi 0, %s133
      %s148 = sphi 0, %s134
      %s152 = sphi 0, %s152
      %s154 = sphi 0, %s152
      %s155 = sphi 0, %s154
      %s169 = sphi 0, %s155
      %s173 = sphi 0, %s173
      %s175 = sphi 0, %s173
      %s176 = sphi 0, %s175
      %s190 = sphi 0, %s176
      %s194 = sphi 0, %s194
      %s196 = sphi 0, %s194
      %s197 = sphi 0, %s196
      %s211 = sphi 0, %s197
      %s215 = sphi 0, %s215
      %s217 = sphi 0, %s215
      %s218 = sphi 0, %s217
      %s232 = sphi 0, %s218
      %s236 = sphi 0, %s236
      %s238 = sphi 0, %s236
      %s239 = sphi 0, %s238
      %s253 = sphi 0, %s239
      %s257 = sphi 0, %s257
      %s259 = sphi 0, %s257
      %s260 = sphi 0, %s259
      %s274 = sphi 0, %s260
      %s284 = sphi 0, %s286
      %s287 = sphi 0, %s284
      %s288 = sphi 0, %s287
      %s304 = sphi 0, %s288
    $region4: #{tpu_custom_call.1} parent=1 // loop_header_branch
      %29 = sbr.rel (%p27) target = $region8
    $region5: #{tpu_custom_call.1} parent=1 // loop_body
      %s31 = ssub.s32 %s26, 1
      %s32 = ssub.s32 %s26, 2
      %s42 = sadd.s32 1, %s35
      %p43 = scmp.ge.s32.totalorder %s42, 1
      %s44 = scalar_select %p43, 0, %s42
      %s45 = sadd.s32 1, %s34
      %s46 = scalar_select %p43, %s45, %s34
      %p47 = scmp.ge.s32.totalorder %s46, 4
      %s48 = scalar_select %p47, 0, %s46
      %s49 = sadd.s32 1, %s33
      %s50 = scalar_select %p47, %s49, %s33
      %p51 = scmp.ge.s32.totalorder %s50, 2
      %s52 = scalar_select %p51, 0, %s50
      %s53 = ssub.s32 %s33, %s52
      %p54 = scmp.eq.s32.totalorder %s53, 0
      %s56 = sadd.s32 %s55, 1
      %s57 = scalar_select %p54, %s55, %s56
      %p60 = pneg %p54
      %p61 = scmp.eq.s32.totalorder %s26, 7
      %p62 = por %p60, %p61
      %p63 = scmp.ne.s32.totalorder %s55, %s58
      %p64 = scmp.eq.s32.totalorder %s26, 0
      %p65 = por %p63, %p64
      %p66 = scmp.ne.s32.totalorder %s55, %s58
      %p67 = scmp.eq.s32.totalorder %s31, 7
      %p68 = por %p66, %p67
      %p69 = scmp.ne.s32.totalorder %s58, %s59
      %p70 = scmp.eq.s32.totalorder %s31, 0
      %p71 = por %p69, %p70
      %p72 = scmp.ne.s32.totalorder %s58, %s59
      %p73 = scmp.eq.s32.totalorder %s32, 7
      %p74 = por %p72, %p73
      %p76 = scmp.ne.s32.totalorder %s59, %s75
      %p77 = scmp.eq.s32.totalorder %s32, 0
      %p78 = por %p76, %p77
      %s79 = ssub.s32 %s33, %s52
      %p80 = scmp.eq.s32.totalorder %s79, 0
      %s82 = sadd.s32 %s81, 1
      %s83 = scalar_select %p80, %s81, %s82
      %p86 = pneg %p80
      %p87 = scmp.eq.s32.totalorder %s26, 7
      %p88 = por %p86, %p87
      %p89 = scmp.ne.s32.totalorder %s81, %s84
      %p90 = scmp.eq.s32.totalorder %s26, 0
      %p91 = por %p89, %p90
      %p92 = scmp.ne.s32.totalorder %s81, %s84
      %p93 = scmp.eq.s32.totalorder %s31, 7
      %p94 = por %p92, %p93
      %p95 = scmp.ne.s32.totalorder %s84, %s85
      %p96 = scmp.eq.s32.totalorder %s31, 0
      %p97 = por %p95, %p96
      %p98 = scmp.ne.s32.totalorder %s84, %s85
      %p99 = scmp.eq.s32.totalorder %s32, 7
      %p100 = por %p98, %p99
      %p102 = scmp.ne.s32.totalorder %s85, %s101
      %p103 = scmp.eq.s32.totalorder %s32, 0
      %p104 = por %p102, %p103
      %s105 = ssub.s32 %s33, %s52
      %p106 = scmp.eq.s32.totalorder %s105, 0
      %s108 = sadd.s32 %s107, 1
      %s109 = scalar_select %p106, %s107, %s108
      %p112 = pneg %p106
      %p113 = scmp.eq.s32.totalorder %s26, 7
      %p114 = por %p112, %p113
      %p115 = scmp.ne.s32.totalorder %s107, %s110
      %p116 = scmp.eq.s32.totalorder %s26, 0
      %p117 = por %p115, %p116
      %p118 = scmp.ne.s32.totalorder %s107, %s110
      %p119 = scmp.eq.s32.totalorder %s31, 7
      %p120 = por %p118, %p119
      %p121 = scmp.ne.s32.totalorder %s110, %s111
      %p122 = scmp.eq.s32.totalorder %s31, 0
      %p123 = por %p121, %p122
      %p124 = scmp.ne.s32.totalorder %s110, %s111
      %p125 = scmp.eq.s32.totalorder %s32, 7
      %p126 = por %p124, %p125
      %p128 = scmp.ne.s32.totalorder %s111, %s127
      %p129 = scmp.eq.s32.totalorder %s32, 0
      %p130 = por %p128, %p129
      %s132 = sadd.s32 %s131, 1
      %p135 = scmp.eq.s32.totalorder %s26, 7
      %p136 = scmp.ne.s32.totalorder %s131, %s133
      %p137 = scmp.eq.s32.totalorder %s26, 0
      %p138 = por %p136, %p137
      %p139 = scmp.ne.s32.totalorder %s131, %s133
      %p140 = scmp.eq.s32.totalorder %s31, 7
      %p141 = por %p139, %p140
      %p142 = scmp.ne.s32.totalorder %s133, %s134
      %p143 = scmp.eq.s32.totalorder %s31, 0
      %p144 = por %p142, %p143
      %p145 = scmp.ne.s32.totalorder %s133, %s134
      %p146 = scmp.eq.s32.totalorder %s32, 7
      %p147 = por %p145, %p146
      %p149 = scmp.ne.s32.totalorder %s134, %s148
      %p150 = scmp.eq.s32.totalorder %s32, 0
      %p151 = por %p149, %p150
      %s153 = sadd.s32 %s152, 1
      %p156 = scmp.eq.s32.totalorder %s26, 7
      %p157 = scmp.ne.s32.totalorder %s152, %s154
      %p158 = scmp.eq.s32.totalorder %s26, 0
      %p159 = por %p157, %p158
      %p160 = scmp.ne.s32.totalorder %s152, %s154
      %p161 = scmp.eq.s32.totalorder %s31, 7
      %p162 = por %p160, %p161
      %p163 = scmp.ne.s32.totalorder %s154, %s155
      %p164 = scmp.eq.s32.totalorder %s31, 0
      %p165 = por %p163, %p164
      %p166 = scmp.ne.s32.totalorder %s154, %s155
      %p167 = scmp.eq.s32.totalorder %s32, 7
      %p168 = por %p166, %p167
      %p170 = scmp.ne.s32.totalorder %s155, %s169
      %p171 = scmp.eq.s32.totalorder %s32, 0
      %p172 = por %p170, %p171
      %s174 = sadd.s32 %s173, 1
      %p177 = scmp.eq.s32.totalorder %s26, 7
      %p178 = scmp.ne.s32.totalorder %s173, %s175
      %p179 = scmp.eq.s32.totalorder %s26, 0
      %p180 = por %p178, %p179
      %p181 = scmp.ne.s32.totalorder %s173, %s175
      %p182 = scmp.eq.s32.totalorder %s31, 7
      %p183 = por %p181, %p182
      %p184 = scmp.ne.s32.totalorder %s175, %s176
      %p185 = scmp.eq.s32.totalorder %s31, 0
      %p186 = por %p184, %p185
      %p187 = scmp.ne.s32.totalorder %s175, %s176
      %p188 = scmp.eq.s32.totalorder %s32, 7
      %p189 = por %p187, %p188
      %p191 = scmp.ne.s32.totalorder %s176, %s190
      %p192 = scmp.eq.s32.totalorder %s32, 0
      %p193 = por %p191, %p192
      %s195 = sadd.s32 %s194, 1
      %p198 = scmp.eq.s32.totalorder %s26, 7
      %p199 = scmp.ne.s32.totalorder %s194, %s196
      %p200 = scmp.eq.s32.totalorder %s26, 0
      %p201 = por %p199, %p200
      %p202 = scmp.ne.s32.totalorder %s194, %s196
      %p203 = scmp.eq.s32.totalorder %s31, 7
      %p204 = por %p202, %p203
      %p205 = scmp.ne.s32.totalorder %s196, %s197
      %p206 = scmp.eq.s32.totalorder %s31, 0
      %p207 = por %p205, %p206
      %p208 = scmp.ne.s32.totalorder %s196, %s197
      %p209 = scmp.eq.s32.totalorder %s32, 7
      %p210 = por %p208, %p209
      %p212 = scmp.ne.s32.totalorder %s197, %s211
      %p213 = scmp.eq.s32.totalorder %s32, 0
      %p214 = por %p212, %p213
      %s216 = sadd.s32 %s215, 1
      %p219 = scmp.eq.s32.totalorder %s26, 7
      %p220 = scmp.ne.s32.totalorder %s215, %s217
      %p221 = scmp.eq.s32.totalorder %s26, 0
      %p222 = por %p220, %p221
      %p223 = scmp.ne.s32.totalorder %s215, %s217
      %p224 = scmp.eq.s32.totalorder %s31, 7
      %p225 = por %p223, %p224
      %p226 = scmp.ne.s32.totalorder %s217, %s218
      %p227 = scmp.eq.s32.totalorder %s31, 0
      %p228 = por %p226, %p227
      %p229 = scmp.ne.s32.totalorder %s217, %s218
      %p230 = scmp.eq.s32.totalorder %s32, 7
      %p231 = por %p229, %p230
      %p233 = scmp.ne.s32.totalorder %s218, %s232
      %p234 = scmp.eq.s32.totalorder %s32, 0
      %p235 = por %p233, %p234
      %s237 = sadd.s32 %s236, 1
      %p240 = scmp.eq.s32.totalorder %s26, 7
      %p241 = scmp.ne.s32.totalorder %s236, %s238
      %p242 = scmp.eq.s32.totalorder %s26, 0
      %p243 = por %p241, %p242
      %p244 = scmp.ne.s32.totalorder %s236, %s238
      %p245 = scmp.eq.s32.totalorder %s31, 7
      %p246 = por %p244, %p245
      %p247 = scmp.ne.s32.totalorder %s238, %s239
      %p248 = scmp.eq.s32.totalorder %s31, 0
      %p249 = por %p247, %p248
      %p250 = scmp.ne.s32.totalorder %s238, %s239
      %p251 = scmp.eq.s32.totalorder %s32, 7
      %p252 = por %p250, %p251
      %p254 = scmp.ne.s32.totalorder %s239, %s253
      %p255 = scmp.eq.s32.totalorder %s32, 0
      %p256 = por %p254, %p255
      %s258 = sadd.s32 %s257, 1
      %p261 = scmp.eq.s32.totalorder %s26, 7
      %p262 = scmp.ne.s32.totalorder %s257, %s259
      %p263 = scmp.eq.s32.totalorder %s26, 0
      %p264 = por %p262, %p263
      %p265 = scmp.ne.s32.totalorder %s257, %s259
      %p266 = scmp.eq.s32.totalorder %s31, 7
      %p267 = por %p265, %p266
      %p268 = scmp.ne.s32.totalorder %s259, %s260
      %p269 = scmp.eq.s32.totalorder %s31, 0
      %p270 = por %p268, %p269
      %p271 = scmp.ne.s32.totalorder %s259, %s260
      %p272 = scmp.eq.s32.totalorder %s32, 7
      %p273 = por %p271, %p272
      %p275 = scmp.ne.s32.totalorder %s260, %s274
      %p276 = scmp.eq.s32.totalorder %s32, 0
      %p277 = por %p275, %p276
      %s278 = ssub.s32 %s33, %s52
      %s279 = ssub.s32 %s34, %s48
      %s280 = sor.u32 %s278, %s279
      %s281 = ssub.s32 %s35, %s44
      %s282 = sor.u32 %s280, %s281
      %p283 = scmp.eq.s32.totalorder %s282, 0
      %s285 = sadd.s32 %s284, 1
      %s286 = scalar_select %p283, %s284, %s285
      %p289 = pneg %p283
      %p290 = scmp.eq.s32.totalorder %s26, 7
      %p291 = por %p289, %p290
      %p292 = scmp.ne.s32.totalorder %s284, %s287
      %p293 = scmp.eq.s32.totalorder %s26, 0
      %p294 = por %p292, %p293
      %p295 = scmp.ne.s32.totalorder %s284, %s287
      %p296 = scmp.eq.s32.totalorder %s31, 7
      %p297 = por %p295, %p296
      %p298 = scmp.ne.s32.totalorder %s287, %s288
      %p299 = scmp.eq.s32.totalorder %s31, 0
      %p300 = por %p298, %p299
      %p301 = scmp.ne.s32.totalorder %s287, %s288
      %p302 = scmp.eq.s32.totalorder %s32, 7
      %p303 = por %p301, %p302
      %p305 = scmp.ne.s32.totalorder %s288, %s304
      %p306 = scmp.eq.s32.totalorder %s32, 0
      %p307 = por %p305, %p306
      %p308 = scmp.le.s32.totalorder 1, %s26
      %p309 = scmp.lt.s32.totalorder %s26, 9
      %p310 = pnand %p308, %p309
      %p311 = pneg %p310
      // Predicated region
      $region9: #{tpu_custom_call.1} parent=5 // pred_check
        _
      $region10: #{tpu_custom_call.1} parent=5 // pred_check_branch
        %313 = sbr.rel (%p310) target = $region12
      $region11: #{tpu_custom_call.1} parent=5 // pred_region
        %s314 = ssub.s32 %s26, 1
        // Predicated region
        $region13: #{tpu_custom_call.1} parent=11 // pred_check
          %p315 = pneg %p144
        $region14: #{tpu_custom_call.1} parent=11 // pred_check_branch
          %317 = sbr.rel (%p315) target = $region16
        $region15: #{tpu_custom_call.1} parent=11 // pred_region
          _
        $region16: #{tpu_custom_call.1} parent=11 // pred_fallthru
          _
        // Predicated region
        $region17: #{tpu_custom_call.1} parent=11 // pred_check
          %p318 = pneg %p165
        $region18: #{tpu_custom_call.1} parent=11 // pred_check_branch
          %320 = sbr.rel (%p318) target = $region20
        $region19: #{tpu_custom_call.1} parent=11 // pred_region
          %s322 = ssub.s32 16, 16
          %323 = vsyncadd [#allocation10], %s322
          %s325 = sshll.u32 [#allocation11], 4
          %s326 = int_to_ptr.vmem [resolvable:$true] %s325
          %328 = dma.hbm_to_vmem [thread:$0]  %s4, 16, %s326, [#allocation10]
        $region20: #{tpu_custom_call.1} parent=11 // pred_fallthru
          _
        // Predicated region
        $region21: #{tpu_custom_call.1} parent=11 // pred_check
          %p329 = pneg %p186
        $region22: #{tpu_custom_call.1} parent=11 // pred_check_branch
          %331 = sbr.rel (%p329) target = $region24
        $region23: #{tpu_custom_call.1} parent=11 // pred_region
          _
        $region24: #{tpu_custom_call.1} parent=11 // pred_fallthru
          _
        // Predicated region
        $region25: #{tpu_custom_call.1} parent=11 // pred_check
          %p332 = pneg %p207
        $region26: #{tpu_custom_call.1} parent=11 // pred_check_branch
          %334 = sbr.rel (%p332) target = $region28
        $region27: #{tpu_custom_call.1} parent=11 // pred_region
          %s336 = ssub.s32 16, 16
          %337 = vsyncadd [#allocation13], %s336
          %s339 = sshll.u32 [#allocation12], 4
          %s340 = int_to_ptr.vmem [resolvable:$true] %s339
          %342 = dma.hbm_to_vmem [thread:$0]  %s6, 16, %s340, [#allocation13]
        $region28: #{tpu_custom_call.1} parent=11 // pred_fallthru
          _
        // Predicated region
        $region29: #{tpu_custom_call.1} parent=11 // pred_check
          %p343 = pneg %p228
        $region30: #{tpu_custom_call.1} parent=11 // pred_check_branch
          %345 = sbr.rel (%p343) target = $region32
        $region31: #{tpu_custom_call.1} parent=11 // pred_region
          _
        $region32: #{tpu_custom_call.1} parent=11 // pred_fallthru
          _
        // Predicated region
        $region33: #{tpu_custom_call.1} parent=11 // pred_check
          %p346 = pneg %p249
        $region34: #{tpu_custom_call.1} parent=11 // pred_check_branch
          %348 = sbr.rel (%p346) target = $region36
        $region35: #{tpu_custom_call.1} parent=11 // pred_region
          _
        $region36: #{tpu_custom_call.1} parent=11 // pred_fallthru
          _
        // Predicated region
        $region37: #{tpu_custom_call.1} parent=11 // pred_check
          %p349 = pneg %p270
        $region38: #{tpu_custom_call.1} parent=11 // pred_check_branch
          %351 = sbr.rel (%p349) target = $region40
        $region39: #{tpu_custom_call.1} parent=11 // pred_region
          _
        $region40: #{tpu_custom_call.1} parent=11 // pred_fallthru
          _
      $region12: #{tpu_custom_call.1} parent=5 // pred_fallthru
        _
      %p352 = scmp.lt.s32.totalorder %s26, 8
      // Predicated region
      $region41: #{tpu_custom_call.1} parent=5 // pred_check
        %p353 = pneg %p352
      $region42: #{tpu_custom_call.1} parent=5 // pred_check_branch
        %355 = sbr.rel (%p353) target = $region44
      $region43: #{tpu_custom_call.1} parent=5 // pred_region
        // Predicated region
        $region45: #{tpu_custom_call.1} parent=43 // pred_check
          %p356 = pneg %p65
        $region46: #{tpu_custom_call.1} parent=43 // pred_check_branch
          %358 = sbr.rel (%p356) target = $region48
        $region47: #{tpu_custom_call.1} parent=43 // pred_region
          %s359 = sand.u32 %s55, 1
          %s360 = scalar_lea.sflag [#allocation7], %s359
          %s361 = sand.u32 %s55, 1
          %s362 = smul.addr %s361, 8
          %s363 = scalar_lea.vmem [#allocation6], %s362
          %s365 = ssub.s32 128, 128
          %366 = vsyncadd %s360, %s365
          %s367 = smul.addr %s33, 128
          %s368 = scalar_lea.hbm %s0, %s367
          %s370 = sshll.u32 %s363, 4
          %s371 = int_to_ptr.vmem [resolvable:$true] %s370
          %373 = dma.hbm_to_vmem [thread:$0]  %s368, 128, %s371, %s360
        $region48: #{tpu_custom_call.1} parent=43 // pred_fallthru
          _
        // Predicated region
        $region49: #{tpu_custom_call.1} parent=43 // pred_check
          %p374 = pneg %p91
        $region50: #{tpu_custom_call.1} parent=43 // pred_check_branch
          %376 = sbr.rel (%p374) target = $region52
        $region51: #{tpu_custom_call.1} parent=43 // pred_region
          %p377 = scmp.lt.s32.totalorder %s33, 1
          %s378 = scalar_select %p377, %s33, 1
          %s379 = smul.addr %s378, 8
          %s380 = scalar_lea.vmem %s1, %s379
        $region52: #{tpu_custom_call.1} parent=43 // pred_fallthru
          _
        // Predicated region
        $region53: #{tpu_custom_call.1} parent=43 // pred_check
          %p381 = pneg %p117
        $region54: #{tpu_custom_call.1} parent=43 // pred_check_branch
          %383 = sbr.rel (%p381) target = $region56
        $region55: #{tpu_custom_call.1} parent=43 // pred_region
          %s384 = sand.u32 %s26, 1
          %s385 = scalar_lea.sflag [#allocation10], %s384
          %s386 = sand.u32 %s107, 1
          %s387 = scalar_lea.vmem [#allocation9], %s386
          %s389 = ssub.s32 16, 16
          %390 = vsyncadd %s385, %s389
          %s391 = smul.addr %s33, 16
          %s392 = scalar_lea.hbm %s2, %s391
          %s394 = sshll.u32 %s387, 4
          %s395 = int_to_ptr.vmem [resolvable:$true] %s394
          %397 = dma.hbm_to_vmem [thread:$0]  %s392, 16, %s395, %s385
        $region56: #{tpu_custom_call.1} parent=43 // pred_fallthru
          _
      $region44: #{tpu_custom_call.1} parent=5 // pred_fallthru
        _
      %p398 = scmp.le.s32.totalorder 1, %s26
      %p399 = scmp.lt.s32.totalorder %s26, 9
      %p400 = pnand %p398, %p399
      %p401 = pneg %p400
      // Predicated region
      $region57: #{tpu_custom_call.1} parent=5 // pred_check
        _
      $region58: #{tpu_custom_call.1} parent=5 // pred_check_branch
        %403 = sbr.rel (%p400) target = $region60
      $region59: #{tpu_custom_call.1} parent=5 // pred_region
        %s404 = ssub.s32 %s26, 1
        %s405 = sand.u32 %s58, 1
        %s406 = scalar_lea.sflag [#allocation7], %s405
        %s407 = sand.u32 %s58, 1
        %s408 = smul.addr %s407, 8
        %s409 = scalar_lea.vmem [#allocation6], %s408
        // Predicated region
        $region61: #{tpu_custom_call.1} parent=59 // pred_check
          %p410 = pneg %p71
        $region62: #{tpu_custom_call.1} parent=59 // pred_check_branch
          %412 = sbr.rel (%p410) target = $region64
        $region63: #{tpu_custom_call.1} parent=59 // pred_region
          %413 = dma.done %s406, 128
        $region64: #{tpu_custom_call.1} parent=59 // pred_fallthru
          _
        %s414 = sand.u32 %s31, 1
        %s415 = scalar_lea.sflag [#allocation10], %s414
        %s416 = sand.u32 %s110, 1
        %s417 = scalar_lea.vmem [#allocation9], %s416
        // Predicated region
        $region65: #{tpu_custom_call.1} parent=59 // pred_check
          %p418 = pneg %p123
        $region66: #{tpu_custom_call.1} parent=59 // pred_check_branch
          %420 = sbr.rel (%p418) target = $region68
        $region67: #{tpu_custom_call.1} parent=59 // pred_region
          %421 = dma.done %s415, 16
        $region68: #{tpu_custom_call.1} parent=59 // pred_fallthru
          _
        // Predicated region
        $region69: #{tpu_custom_call.1} parent=59 // pred_check
          %p422 = pneg %p165
        $region70: #{tpu_custom_call.1} parent=59 // pred_check_branch
          %424 = sbr.rel (%p422) target = $region72
        $region71: #{tpu_custom_call.1} parent=59 // pred_region
          %425 = dma.done [#allocation10], 16
        $region72: #{tpu_custom_call.1} parent=59 // pred_fallthru
          _
        // Predicated region
        $region73: #{tpu_custom_call.1} parent=59 // pred_check
          %p426 = pneg %p207
        $region74: #{tpu_custom_call.1} parent=59 // pred_check_branch
          %428 = sbr.rel (%p426) target = $region76
        $region75: #{tpu_custom_call.1} parent=59 // pred_region
          %429 = dma.done [#allocation13], 16
        $region76: #{tpu_custom_call.1} parent=59 // pred_fallthru
          _
        %s430 = sand.u32 %s58, 1
        %s431 = scalar_lea.sflag [#allocation7], %s430
        %s432 = sand.u32 %s58, 1
        %s433 = smul.addr %s432, 8
        %s434 = scalar_lea.vmem [#allocation6], %s433
        %p435 = pneg %p71
        %p436 = pneg %p68
        %p437 = scmp.lt.s32.totalorder %s36, 1
        %s438 = scalar_select %p437, %s36, 1
        %s439 = smul.addr %s438, 8
        %s440 = scalar_lea.vmem %s1, %s439
        %p441 = pneg %p97
        %p442 = pneg %p94
        %s443 = sand.u32 %s31, 1
        %s444 = scalar_lea.sflag [#allocation10], %s443
        %s445 = sand.u32 %s110, 1
        %s446 = scalar_lea.vmem [#allocation9], %s445
        %p447 = pneg %p123
        %p448 = pneg %p120
        %p449 = pneg %p144
        %p450 = pneg %p141
        %p451 = pneg %p165
        %p452 = pneg %p162
        %p453 = pneg %p186
        %p454 = pneg %p183
        %p455 = pneg %p207
        %p456 = pneg %p204
        %p457 = pneg %p228
        %p458 = pneg %p225
        %p459 = pneg %p249
        %p460 = pneg %p246
        %p461 = pneg %p270
        %p462 = pneg %p267
        %p463 = pneg %p300
        %p464 = pneg %p297
        %s465 = sand.u32 %s287, 1
        %s466 = scalar_lea.sflag [#allocation8], %s465
        %s467 = sand.u32 %s287, 1
        %s468 = smul.addr %s467, 4
        %s469 = scalar_lea.vmem [#allocation14], %s468
        %p470 = scmp.lt.s32.totalorder %s36, 1
        %s471 = scalar_select %p470, %s36, 1
        %s472 = smul.addr %s471, 8
        %s473 = scalar_lea.vmem %s1, %s472
        %p474 = scmp.eq.s32.totalorder %s37, 0
        %p475 = scmp.eq.s32.totalorder %s38, 0
        %p476 = pnand %p474, %p475
        %p477 = pneg %p476
        // Predicated region
        $region77: #{tpu_custom_call.1} parent=59 // pred_check
          _
        $region78: #{tpu_custom_call.1} parent=59 // pred_check_branch
          %479 = sbr.rel (%p476) target = $region80
        $region79: #{tpu_custom_call.1} parent=59 // pred_region
          %v480 = vld [vmem:[%s409] sm:$0xff]
          %v481 = vld [vmem:[%s3] sm:$0xff]
          %v482 = vld [vmem:[%s3 + $0x8] sm:$0xff]
          %v483 = vld [vmem:[%s3 + $0x10] sm:$0xff]
          %v484 = vld [vmem:[%s3 + $0x18] sm:$0xff]
          %v485 = vld [vmem:[#allocation11] sm:$0x1]
          %v487 = vlaneseq
          %v488 = vshrl.u32 %v487, 7
          %v489 = vsub.s32 0, %v488
          %v490 = vrot.slane %v485, %v489
          %vm492 = vcmask 261120
          %v494 = vsel %vm492, %v480, 0
          %496 = vmatprep.subr.mxu0 0.0
          %497 = vmatpush1.msra.mxu0 %v481
          %498 = vmatprep.subr.mxu0 0.0
          %499 = vmatpush1.msra.mxu0 %v482
          %500 = vmatprep.subr.mxu0 0.0
          %501 = vmatpush1.msra.mxu0 %v483
          %502 = vmatprep.subr.mxu0 0.0
          %503 = vmatpush1.msra.mxu0 %v484
          %504 = vmatprep.subr.mxu0 0.0
          %505 = vmatpush1.msra.mxu0 0.0
          %506 = vmatprep.subr.mxu0 0.0
          %507 = vmatpush1.msra.mxu0 0.0
          %508 = vmatprep.subr.mxu0 0.0
          %509 = vmatpush1.msra.mxu0 0.0
          %510 = vmatprep.subr.mxu0 0.0
          %511 = vmatpush1.msra.mxu0 0.0
          %512 = vmatprep.subr.mxu0 0.0
          %513 = vmatpush1.msra.mxu0 0.0
          %514 = vmatprep.subr.mxu0 0.0
          %515 = vmatpush1.msra.mxu0 0.0
          %516 = vmatprep.subr.mxu0 0.0
          %517 = vmatpush1.msra.mxu0 0.0
          %518 = vmatprep.subr.mxu0 0.0
          %519 = vmatpush1.msra.mxu0 0.0
          %520 = vmatprep.subr.mxu0 0.0
          %521 = vmatpush1.msra.mxu0 0.0
          %522 = vmatprep.subr.mxu0 0.0
          %523 = vmatpush1.msra.mxu0 0.0
          %524 = vmatprep.subr.mxu0 0.0
          %525 = vmatpush1.msra.mxu0 0.0
          %526 = vmatprep.subr.mxu0 0.0
          %527 = vmatpush1.msra.mxu0 0.0
          %528 = vmatprep.subr.mxu0 0.0
          %529 = vmatpush1.msra.mxu0 0.0
          %530 = vmatprep.subr.mxu0 0.0
          %531 = vmatpush1.msra.mxu0 0.0
          %532 = vmatprep.subr.mxu0 0.0
          %533 = vmatpush1.msra.mxu0 0.0
          %534 = vmatprep.subr.mxu0 0.0
          %535 = vmatpush1.msra.mxu0 0.0
          %536 = vmatprep.subr.mxu0 0.0
          %537 = vmatpush1.msra.mxu0 0.0
          %538 = vmatprep.subr.mxu0 0.0
          %539 = vmatpush1.msra.mxu0 0.0
          %540 = vmatprep.subr.mxu0 0.0
          %541 = vmatpush1.msra.mxu0 0.0
          %542 = vmatprep.subr.mxu0 0.0
          %543 = vmatpush1.msra.mxu0 0.0
          %544 = vmatprep.subr.mxu0 0.0
          %545 = vmatpush1.msra.mxu0 0.0
          %546 = vmatprep.subr.mxu0 0.0
          %547 = vmatpush1.msra.mxu0 0.0
          %548 = vmatprep.subr.mxu0 0.0
          %549 = vmatpush1.msra.mxu0 0.0
          %550 = vmatprep.subr.mxu0 0.0
          %551 = vmatpush1.msra.mxu0 0.0
          %552 = vmatprep.subr.mxu0 0.0
          %553 = vmatpush1.msra.mxu0 0.0
          %554 = vmatprep.subr.mxu0 0.0
          %555 = vmatpush1.msra.mxu0 0.0
          %556 = vmatprep.subr.mxu0 0.0
          %557 = vmatpush1.msra.mxu0 0.0
          %558 = vmatprep.subr.mxu0 0.0
          %559 = vmatpush1.msra.mxu0 0.0
          %560 = vmatprep.mubr.f32.mxu0 0.0
          %561 = vmatmul.mubr.f32.gmra.mrb[0].mxu0 %v494
          %v562 = vpop.f32.mrb[0].mxu0
          %v563 = vadd.f32 %v490, %v562
          %v564 = vpop.f32.mrb[0].mxu0
          %565 = vdwg.mxu0
          %v566 = vld [vmem:[%s7] sm:$0xff]
          %v567 = vmul.f32 %v563, %v566
          %v568 = vld [vmem:[%s9] sm:$0xff]
          %v569 = vld [vmem:[%s9 + $0x8] sm:$0xff]
          %v570 = vld [vmem:[%s9 + $0x10] sm:$0xff]
          %v571 = vld [vmem:[%s9 + $0x18] sm:$0xff]
          %v573 = vsel %vm492, %v563, 0
          %575 = vmatprep.subr.mxu0 0.0
          %576 = vmatpush1.msra.mxu0 %v568
          %577 = vmatprep.subr.mxu0 0.0
          %578 = vmatpush1.msra.mxu0 %v569
          %579 = vmatprep.subr.mxu0 0.0
          %580 = vmatpush1.msra.mxu0 %v570
          %581 = vmatprep.subr.mxu0 0.0
          %582 = vmatpush1.msra.mxu0 %v571
          %583 = vmatprep.subr.mxu0 0.0
          %584 = vmatpush1.msra.mxu0 0.0
          %585 = vmatprep.subr.mxu0 0.0
          %586 = vmatpush1.msra.mxu0 0.0
          %587 = vmatprep.subr.mxu0 0.0
          %588 = vmatpush1.msra.mxu0 0.0
          %589 = vmatprep.subr.mxu0 0.0
          %590 = vmatpush1.msra.mxu0 0.0
          %591 = vmatprep.subr.mxu0 0.0
          %592 = vmatpush1.msra.mxu0 0.0
          %593 = vmatprep.subr.mxu0 0.0
          %594 = vmatpush1.msra.mxu0 0.0
          %595 = vmatprep.subr.mxu0 0.0
          %596 = vmatpush1.msra.mxu0 0.0
          %597 = vmatprep.subr.mxu0 0.0
          %598 = vmatpush1.msra.mxu0 0.0
          %599 = vmatprep.subr.mxu0 0.0
          %600 = vmatpush1.msra.mxu0 0.0
          %601 = vmatprep.subr.mxu0 0.0
          %602 = vmatpush1.msra.mxu0 0.0
          %603 = vmatprep.subr.mxu0 0.0
          %604 = vmatpush1.msra.mxu0 0.0
          %605 = vmatprep.subr.mxu0 0.0
          %606 = vmatpush1.msra.mxu0 0.0
          %607 = vmatprep.subr.mxu0 0.0
          %608 = vmatpush1.msra.mxu0 0.0
          %609 = vmatprep.subr.mxu0 0.0
          %610 = vmatpush1.msra.mxu0 0.0
          %611 = vmatprep.subr.mxu0 0.0
          %612 = vmatpush1.msra.mxu0 0.0
          %613 = vmatprep.subr.mxu0 0.0
          %614 = vmatpush1.msra.mxu0 0.0
          %615 = vmatprep.subr.mxu0 0.0
          %616 = vmatpush1.msra.mxu0 0.0
          %617 = vmatprep.subr.mxu0 0.0
          %618 = vmatpush1.msra.mxu0 0.0
          %619 = vmatprep.subr.mxu0 0.0
          %620 = vmatpush1.msra.mxu0 0.0
          %621 = vmatprep.subr.mxu0 0.0
          %622 = vmatpush1.msra.mxu0 0.0
          %623 = vmatprep.subr.mxu0 0.0
          %624 = vmatpush1.msra.mxu0 0.0
          %625 = vmatprep.subr.mxu0 0.0
          %626 = vmatpush1.msra.mxu0 0.0
          %627 = vmatprep.subr.mxu0 0.0
          %628 = vmatpush1.msra.mxu0 0.0
          %629 = vmatprep.subr.mxu0 0.0
          %630 = vmatpush1.msra.mxu0 0.0
          %631 = vmatprep.subr.mxu0 0.0
          %632 = vmatpush1.msra.mxu0 0.0
          %633 = vmatprep.subr.mxu0 0.0
          %634 = vmatpush1.msra.mxu0 0.0
          %635 = vmatprep.subr.mxu0 0.0
          %636 = vmatpush1.msra.mxu0 0.0
          %637 = vmatprep.subr.mxu0 0.0
          %638 = vmatpush1.msra.mxu0 0.0
          %639 = vmatprep.mubr.f32.mxu0 0.0
          %640 = vmatmul.mubr.f32.gmra.mrb[0].mxu0 %v573
          %v641 = vpop.f32.mrb[0].mxu0
          %v642 = vadd.f32 0.0, %v641
          %v643 = vpop.f32.mrb[0].mxu0
          %644 = vdwg.mxu0
          %v645 = vld [vmem:[%s8] sm:$0xff]
          %v646 = vmul.f32 %v642, %v645
          %v647 = vadd.f32 %v567, %v646
          %v648 = vlaneseq
          %v649 = vshrl.u32 %v648, 7
          %v650 = vlaneseq
          %v651 = vand.u32 %v650, 127
          %v652 = vld [vmem:[%s473] sm:$0xff]
          %654 = vset.pattern.permute.xlu0 0
          %655 = vperm.xlu0 %654, %v652
          %v656 = vpop.permute.xlu0 %655
          %659 = vrot.lane.b32.xlu0 %v647, 112
          %v660 = vpop.permute.xlu0 %659
          %vm661 = vcmask 130048
          %v662 = vsel %vm661, %v647, 0
          %v664 = vsel %vm661, %v660, 0
          %666 = vmatprep.subr.mxu0 0.0
          %667 = vmatpush1.xpose.msra.mxu0 %v664
          %668 = vmatprep.subr.mxu0 0.0
          %669 = vmatpush1.xpose.msra.mxu0 0.0
          %670 = vmatprep.subr.mxu0 0.0
          %671 = vmatpush1.xpose.msra.mxu0 0.0
          %672 = vmatprep.subr.mxu0 0.0
          %673 = vmatpush1.xpose.msra.mxu0 0.0
          %674 = vmatprep.subr.mxu0 0.0
          %675 = vmatpush1.xpose.msra.mxu0 0.0
          %676 = vmatprep.subr.mxu0 0.0
          %677 = vmatpush1.xpose.msra.mxu0 0.0
          %678 = vmatprep.subr.mxu0 0.0
          %679 = vmatpush1.xpose.msra.mxu0 0.0
          %680 = vmatprep.subr.mxu0 0.0
          %681 = vmatpush1.xpose.msra.mxu0 0.0
          %682 = vmatprep.subr.mxu0 0.0
          %683 = vmatpush1.xpose.msra.mxu0 0.0
          %684 = vmatprep.subr.mxu0 0.0
          %685 = vmatpush1.xpose.msra.mxu0 0.0
          %686 = vmatprep.subr.mxu0 0.0
          %687 = vmatpush1.xpose.msra.mxu0 0.0
          %688 = vmatprep.subr.mxu0 0.0
          %689 = vmatpush1.xpose.msra.mxu0 0.0
          %690 = vmatprep.subr.mxu0 0.0
          %691 = vmatpush1.xpose.msra.mxu0 0.0
          %692 = vmatprep.subr.mxu0 0.0
          %693 = vmatpush1.xpose.msra.mxu0 0.0
          %694 = vmatprep.subr.mxu0 0.0
          %695 = vmatpush1.xpose.msra.mxu0 0.0
          %696 = vmatprep.subr.mxu0 0.0
          %697 = vmatpush1.xpose.msra.mxu0 0.0
          %698 = vmatprep.subr.mxu0 0.0
          %699 = vmatpush1.xpose.msra.mxu0 0.0
          %700 = vmatprep.subr.mxu0 0.0
          %701 = vmatpush1.xpose.msra.mxu0 0.0
          %702 = vmatprep.subr.mxu0 0.0
          %703 = vmatpush1.xpose.msra.mxu0 0.0
          %704 = vmatprep.subr.mxu0 0.0
          %705 = vmatpush1.xpose.msra.mxu0 0.0
          %706 = vmatprep.subr.mxu0 0.0
          %707 = vmatpush1.xpose.msra.mxu0 0.0
          %708 = vmatprep.subr.mxu0 0.0
          %709 = vmatpush1.xpose.msra.mxu0 0.0
          %710 = vmatprep.subr.mxu0 0.0
          %711 = vmatpush1.xpose.msra.mxu0 0.0
          %712 = vmatprep.subr.mxu0 0.0
          %713 = vmatpush1.xpose.msra.mxu0 0.0
          %714 = vmatprep.subr.mxu0 0.0
          %715 = vmatpush1.xpose.msra.mxu0 0.0
          %716 = vmatprep.subr.mxu0 0.0
          %717 = vmatpush1.xpose.msra.mxu0 0.0
          %718 = vmatprep.subr.mxu0 0.0
          %719 = vmatpush1.xpose.msra.mxu0 0.0
          %720 = vmatprep.subr.mxu0 0.0
          %721 = vmatpush1.xpose.msra.mxu0 0.0
          %722 = vmatprep.subr.mxu0 0.0
          %723 = vmatpush1.xpose.msra.mxu0 0.0
          %724 = vmatprep.subr.mxu0 0.0
          %725 = vmatpush1.xpose.msra.mxu0 0.0
          %726 = vmatprep.subr.mxu0 0.0
          %727 = vmatpush1.xpose.msra.mxu0 0.0
          %728 = vmatprep.subr.mxu0 0.0
          %729 = vmatpush1.xpose.msra.mxu0 0.0
          %730 = vmatprep.mubr.f32.mxu0 0.0
          %731 = vmatmul.mubr.f32.gmra.mrb[0].mxu0 %v662
          %v732 = vpop.f32.mrb[0].mxu0
          %v733 = vadd.f32 %v656, %v732
          %v734 = vpop.f32.mrb[0].mxu0
          %735 = vdwg.mxu0
          %v736 = vld [vmem:[%s417] sm:$0x1]
          %v738 = vlaneseq
          %v739 = vshrl.u32 %v738, 7
          %v740 = vsub.s32 0, %v739
          %v741 = vrot.slane %v736, %v740
          %v743 = vadd.f32 %v733, %v741
          %vm744 = vcmp.gt.s32.totalorder %v649, %v651
          %v745 = vsel %vm744, -1e+12, 0.0
          %v746 = vadd.f32 %v743, %v745
          %vm747 = vcmask 64512
          %748 = vst.msk [vmem:[#allocation2] sm:$0xff] %vm747, %v746
          %v749 = vld [vmem:[%s5] sm:$0xff]
          %v750 = vld [vmem:[%s5 + $0x8] sm:$0xff]
          %v751 = vld [vmem:[%s5 + $0x10] sm:$0xff]
          %v752 = vld [vmem:[%s5 + $0x18] sm:$0xff]
          %v753 = vld [vmem:[#allocation12] sm:$0x1]
          %v755 = vlaneseq
          %v756 = vshrl.u32 %v755, 7
          %v757 = vsub.s32 0, %v756
          %v758 = vrot.slane %v753, %v757
          %760 = vmatprep.subr.mxu0 0.0
          %761 = vmatpush1.msra.mxu0 %v749
          %762 = vmatprep.subr.mxu0 0.0
          %763 = vmatpush1.msra.mxu0 %v750
          %764 = vmatprep.subr.mxu0 0.0
          %765 = vmatpush1.msra.mxu0 %v751
          %766 = vmatprep.subr.mxu0 0.0
          %767 = vmatpush1.msra.mxu0 %v752
          %768 = vmatprep.subr.mxu0 0.0
          %769 = vmatpush1.msra.mxu0 0.0
          %770 = vmatprep.subr.mxu0 0.0
          %771 = vmatpush1.msra.mxu0 0.0
          %772 = vmatprep.subr.mxu0 0.0
          %773 = vmatpush1.msra.mxu0 0.0
          %774 = vmatprep.subr.mxu0 0.0
          %775 = vmatpush1.msra.mxu0 0.0
          %776 = vmatprep.subr.mxu0 0.0
          %777 = vmatpush1.msra.mxu0 0.0
          %778 = vmatprep.subr.mxu0 0.0
          %779 = vmatpush1.msra.mxu0 0.0
          %780 = vmatprep.subr.mxu0 0.0
          %781 = vmatpush1.msra.mxu0 0.0
          %782 = vmatprep.subr.mxu0 0.0
          %783 = vmatpush1.msra.mxu0 0.0
          %784 = vmatprep.subr.mxu0 0.0
          %785 = vmatpush1.msra.mxu0 0.0
          %786 = vmatprep.subr.mxu0 0.0
          %787 = vmatpush1.msra.mxu0 0.0
          %788 = vmatprep.subr.mxu0 0.0
          %789 = vmatpush1.msra.mxu0 0.0
          %790 = vmatprep.subr.mxu0 0.0
          %791 = vmatpush1.msra.mxu0 0.0
          %792 = vmatprep.subr.mxu0 0.0
          %793 = vmatpush1.msra.mxu0 0.0
          %794 = vmatprep.subr.mxu0 0.0
          %795 = vmatpush1.msra.mxu0 0.0
          %796 = vmatprep.subr.mxu0 0.0
          %797 = vmatpush1.msra.mxu0 0.0
          %798 = vmatprep.subr.mxu0 0.0
          %799 = vmatpush1.msra.mxu0 0.0
          %800 = vmatprep.subr.mxu0 0.0
          %801 = vmatpush1.msra.mxu0 0.0
          %802 = vmatprep.subr.mxu0 0.0
          %803 = vmatpush1.msra.mxu0 0.0
          %804 = vmatprep.subr.mxu0 0.0
          %805 = vmatpush1.msra.mxu0 0.0
          %806 = vmatprep.subr.mxu0 0.0
          %807 = vmatpush1.msra.mxu0 0.0
          %808 = vmatprep.subr.mxu0 0.0
          %809 = vmatpush1.msra.mxu0 0.0
          %810 = vmatprep.subr.mxu0 0.0
          %811 = vmatpush1.msra.mxu0 0.0
          %812 = vmatprep.subr.mxu0 0.0
          %813 = vmatpush1.msra.mxu0 0.0
          %814 = vmatprep.subr.mxu0 0.0
          %815 = vmatpush1.msra.mxu0 0.0
          %816 = vmatprep.subr.mxu0 0.0
          %817 = vmatpush1.msra.mxu0 0.0
          %818 = vmatprep.subr.mxu0 0.0
          %819 = vmatpush1.msra.mxu0 0.0
          %820 = vmatprep.subr.mxu0 0.0
          %821 = vmatpush1.msra.mxu0 0.0
          %822 = vmatprep.subr.mxu0 0.0
          %823 = vmatpush1.msra.mxu0 0.0
          %824 = vmatprep.mubr.f32.mxu0 0.0
          %825 = vmatmul.mubr.f32.gmra.mrb[0].mxu0 %v573
          %v826 = vpop.f32.mrb[0].mxu0
          %v827 = vadd.f32 %v758, %v826
          %v828 = vpop.f32.mrb[0].mxu0
          %829 = vdwg.mxu0
          %v830 = vmul.f32 %v827, 0.5
          %vm831 = vcmask 31744
          %832 = vst.msk [vmem:[#allocation3] sm:$0xff] %vm831, %v830
          %834 = vrot.lane.b32.xlu0 %v830, 124
          %v835 = vpop.permute.xlu0 %834
          %837 = vxpose.xlu0.b32.start [1/16] %v835, 128
          %838 = vxpose.xlu0.b32.cont [2/16] 0.0, 128
          %839 = vxpose.xlu0.b32.cont [3/16] 0.0, 128
          %840 = vxpose.xlu0.b32.cont [4/16] 0.0, 128
          %841 = vxpose.xlu0.b32.cont [5/16] 0.0, 128
          %842 = vxpose.xlu0.b32.cont [6/16] 0.0, 128
          %843 = vxpose.xlu0.b32.cont [7/16] 0.0, 128
          %844 = vxpose.xlu0.b32.cont [8/16] 0.0, 128
          %845 = vxpose.xlu0.b32.cont [9/16] 0.0, 128
          %846 = vxpose.xlu0.b32.cont [10/16] 0.0, 128
          %847 = vxpose.xlu0.b32.cont [11/16] 0.0, 128
          %848 = vxpose.xlu0.b32.cont [12/16] 0.0, 128
          %849 = vxpose.xlu0.b32.cont [13/16] 0.0, 128
          %850 = vxpose.xlu0.b32.cont [14/16] 0.0, 128
          %851 = vxpose.xlu0.b32.cont [15/16] 0.0, 128
          %852 = vxpose.xlu0.b32.end [16/16] 0.0, 128
          %v853 = vpop.trf.xlu0
          %v854 = vpop.trf.xlu0
          %v855 = vpop.trf.xlu0
          %v856 = vpop.trf.xlu0
          %v857 = vpop.trf.xlu0
          %v858 = vpop.trf.xlu0
          %v859 = vpop.trf.xlu0
          %v860 = vpop.trf.xlu0
          %v861 = vpop.trf.xlu0
          %v862 = vpop.trf.xlu0
          %v863 = vpop.trf.xlu0
          %v864 = vpop.trf.xlu0
          %v865 = vpop.trf.xlu0
          %v866 = vpop.trf.xlu0
          %v867 = vpop.trf.xlu0
          %v868 = vpop.trf.xlu0
          %vm869 = vcmask 60416
          %870 = vst.msk [vmem:[#allocation4] sm:$0xf] %vm869, %v853
        $region80: #{tpu_custom_call.1} parent=59 // pred_fallthru
          _
        // Predicated region
        $region81: #{tpu_custom_call.1} parent=59 // pred_check
          %p871 = pneg %p475
        $region82: #{tpu_custom_call.1} parent=59 // pred_check_branch
          %873 = sbr.rel (%p871) target = $region84
        $region83: #{tpu_custom_call.1} parent=59 // pred_region
          %v874 = vlaneseq
          %v875 = vand.u32 %v874, 127
          %v876 = vstv %s37
          %vm877 = vcmp.eq.s32.totalorder %v875, %v876
          %v878 = vld [vmem:[#allocation3] sm:$0xff]
          %v879 = vsel %vm877, %v878, 0.0
          %vm880 = vcmask 31744
          %v881 = vsel %vm880, %v879, 0.0
          %882 = vadd.xlane.f32.xlu0 %v881
          %v883 = vpop.xlane.xlu0 %882
          %vm884 = vcmask 7168
          %885 = vst.msk [vmem:[#allocation5] sm:$0xff] %vm884, %v883
        $region84: #{tpu_custom_call.1} parent=59 // pred_fallthru
          _
        %s886 = smul.u32 %s38, 8
        %s887 = scalar_lea.vmem [#allocation2], %s886
        %v888 = vld [vmem:[%s887] sm:$0xff]
        %s889 = scalar_lea.vmem [#allocation5], %s886
        %v890 = vld [vmem:[%s889] sm:$0xff]
        %s891 = scalar_lea.vmem [#allocation4], %s37
        %v892 = vld [vmem:[%s891] sm:$0x1]
        %894 = vset.pattern.permute.xlu0 0
        %895 = vperm.xlu0 %894, %v890
        %v896 = vpop.permute.xlu0 %895
        %v898 = vadd.f32 %v888, %v896
        %v899 = vlaneseq
        %v900 = vshrl.u32 %v899, 7
        %v901 = vsub.s32 0, %v900
        %v902 = vrot.slane %v892, %v901
        %v903 = vadd.f32 %v898, %v902
        %v904 = vpack.c.bf16 %v903, %v903
        %vm905 = vcmask 60416
        %906 = vst.msk [vmem:[%s469] sm:$0xf] %vm905, %v904
        %s907 = sand.u32 %s287, 1
        %s908 = scalar_lea.sflag [#allocation8], %s907
        %s909 = sand.u32 %s287, 1
        %s910 = smul.addr %s909, 4
        %s911 = scalar_lea.vmem [#allocation14], %s910
        // Predicated region
        $region85: #{tpu_custom_call.1} parent=59 // pred_check
          %p912 = pneg %p297
        $region86: #{tpu_custom_call.1} parent=59 // pred_check_branch
          %914 = sbr.rel (%p912) target = $region88
        $region87: #{tpu_custom_call.1} parent=59 // pred_region
          %s916 = ssub.s32 64, 64
          %917 = vsyncadd %s908, %s916
          %s918 = sadd.s32 %s38, %s37
          %s919 = smul.addr %s36, 4
          %s920 = sadd.s32 %s918, %s919
          %s921 = smul.addr %s920, 64
          %s922 = scalar_lea.hbm %s10, %s921
          %s924 = sshll.u32 %s911, 4
          %s925 = int_to_ptr.vmem [resolvable:$true] %s924
          %927 = dma.vmem_to_hbm [thread:$0]  %s925, 64, %s922, %s908
        $region88: #{tpu_custom_call.1} parent=59 // pred_fallthru
          _
      $region60: #{tpu_custom_call.1} parent=5 // pred_fallthru
        _
      %p928 = scmp.le.s32.totalorder 2, %s26
      // Predicated region
      $region89: #{tpu_custom_call.1} parent=5 // pred_check
        %p929 = pneg %p928
      $region90: #{tpu_custom_call.1} parent=5 // pred_check_branch
        %931 = sbr.rel (%p929) target = $region92
      $region91: #{tpu_custom_call.1} parent=5 // pred_region
        %s932 = ssub.s32 %s26, 2
        // Predicated region
        $region93: #{tpu_custom_call.1} parent=91 // pred_check
          %p933 = pneg %p303
        $region94: #{tpu_custom_call.1} parent=91 // pred_check_branch
          %935 = sbr.rel (%p933) target = $region96
        $region95: #{tpu_custom_call.1} parent=91 // pred_region
          %s936 = sand.u32 %s288, 1
          %s937 = scalar_lea.sflag [#allocation8], %s936
          %s938 = sand.u32 %s288, 1
          %s939 = smul.addr %s938, 4
          %s940 = scalar_lea.vmem [#allocation14], %s939
          %941 = dma.done %s937, 64
        $region96: #{tpu_custom_call.1} parent=91 // pred_fallthru
          _
      $region92: #{tpu_custom_call.1} parent=5 // pred_fallthru
        _
    $region6: #{tpu_custom_call.1} parent=1 // loop_footer
      %s30 = sadd.s32 1, %s26
    $region7: #{tpu_custom_call.1} parent=1 // loop_footer_branch
      %25 = sbr.rel target = $region3
    $region8: #{tpu_custom_call.1} parent=1 // loop_exit
      _
    %942 = vsyncpa [#allocation7], 1
    %s943 = scalar_lea.sflag [#allocation7], 1
    %944 = vsyncpa %s943, 1
    %945 = vsyncpa [#allocation10], 1
    %s946 = scalar_lea.sflag [#allocation10], 1
    %947 = vsyncpa %s946, 1
    %948 = vsyncpa [#allocation13], 1
    %949 = vsyncpa [#allocation8], 1
    %s950 = scalar_lea.sflag [#allocation8], 1
    %951 = vsyncpa %s950, 1

</llo_original>
